<compile_context>
chip_gen: v7x
topology: tpu7x:2x2x1
jax: 0.10.0
libtpu: 0.0.40
codegen_flags: <defaults>
</compile_context>

<pallas_src>
import numpy as np

import jax
import jax.numpy as jnp
from jax.experimental import pallas as pl
from jax.experimental.pallas import tpu as pltpu

LEAKY_SLOPE = 0.01   # nn.LeakyReLU default
BN_EPS = 1e-5        # nn.BatchNorm1d default
LANE = 128           # lane-dense padding for packed params and the output slab
W_ROWS = 32          # rows per packed weight slab (>= max 2*in_features)


# ------------------------------------------------------------------- kernel

def make_fused_kernel(layer_dims, total_batch):
    """Fused forward kernel for a static tree architecture.

    layer_dims: tuple of (in_features, out_features) in forward-execution order
                (deepest hidden layer first, root last).
    Grid: (pass, batch_tile). pass 0 = BN-statistics pass, pass 1 = output pass.
    """
    num_layers = len(layer_dims)
    root_out = layer_dims[-1][1]
    inv_n = 1.0 / float(total_batch)

    def kernel(gate_ref, bias_ref, wpack_ref, x_ref, out_ref, stats_ref):
        p = pl.program_id(0)          # 0: accumulate BN stats, 1: normalize+output
        t = pl.program_id(1)          # batch tile index
        g = gate_ref[0]               # deterministic gate value (SMEM scalar)
        b_all = bias_ref[...]         # (8, LANE) packed biases / BN affine / b_out

        # ---- hidden layers (run in both passes; recomputing these tiny tree
        #      layers is cheaper than spilling activations to HBM) ----
        x = x_ref[...]
        xcat = jnp.concatenate([x, x], axis=-1)             # [x | x_linear]
        x_g = x
        for li, (in_f, out_f) in enumerate(layer_dims):
            w_slab = wpack_ref[li]                           # (W_ROWS, LANE)
            w_blk = w_slab[: 2 * in_f, : 2 * out_f]          # blockdiag(Wm^T, Wl^T)
            b2 = b_all[li:li + 1, : 2 * out_f]               # [b_mlp | b_lin]
            res = jnp.dot(xcat, w_blk, preferred_element_type=jnp.float32) + b2
            pre = res[:, :out_f]                             # mlp pre-activation
            x_lin = res[:, out_f:]                           # linear path
            x_mlp = jnp.maximum(pre, LEAKY_SLOPE * pre)      # LeakyReLU
            x_g = x_lin + g * (x_mlp - x_lin)                # g*mlp + (1-g)*lin
            if li + 1 < num_layers:
                xcat = jnp.concatenate([x_g, x_lin], axis=-1)
        x_root = x_g                                         # (tile_b, root_out)

        # ---- pass 0: accumulate full-batch BN statistics into VMEM scratch ----
        @pl.when(jnp.logical_and(p == 0, t == 0))
        def _():
            stats_ref[...] = jnp.zeros_like(stats_ref)

        @pl.when(p == 0)
        def _():
            stats_ref[0:1, :] = stats_ref[0:1, :] + jnp.sum(
                x_root, axis=0, keepdims=True)
            stats_ref[1:2, :] = stats_ref[1:2, :] + jnp.sum(
                x_root * x_root, axis=0, keepdims=True)

        # ---- pass 1: BatchNorm (full-batch stats) + lane-dense output linear ----
        @pl.when(p == 1)
        def _():
            mean = stats_ref[0:1, :] * inv_n
            var = stats_ref[1:2, :] * inv_n - mean * mean    # biased variance
            gamma = b_all[num_layers:num_layers + 1, :root_out]
            beta = b_all[num_layers + 1:num_layers + 2, :root_out]
            b_out = b_all[num_layers + 2:num_layers + 3, :]  # (1, LANE), zero-padded
            xn = (x_root - mean) * jax.lax.rsqrt(var + BN_EPS) * gamma + beta
            w_out = wpack_ref[num_layers][:root_out, :]      # (root_out, LANE)
            out_ref[...] = (jnp.dot(xn, w_out, preferred_element_type=jnp.float32)
                            + b_out)

    return kernel


# ------------------------------------------------ architecture & parameters

def build_architecture():
    """Synthetic perfect binary tree: 8 leaves, max_depth=3.

    node_dim_func='const', node_dim_func_param=4, node_min_dim=2
    => every internal node gets 4 output units.

    Returns layers in forward-execution order (deepest hidden layer first), as
    (in_features, out_features, connections), connections = [(in_idx, out_idx)].
    """
    layers = []
    conns = [(list(range(2 * k, 2 * k + 2)), list(range(4 * k, 4 * k + 4)))
             for k in range(4)]
    layers.append((8, 16, conns))                       # depth 2: 4 internal nodes
    conns = [(list(range(8 * k, 8 * k + 8)), list(range(4 * k, 4 * k + 4)))
             for k in range(2)]
    layers.append((16, 8, conns))                       # depth 1: 2 internal nodes
    layers.append((8, 4, [(list(range(8)), list(range(4)))]))   # depth 0: root
    return layers


def _pruning_mask(in_f, out_f, connections):
    mask = np.zeros((out_f, in_f), dtype=np.float32)
    for input_indices, output_indices in connections:
        for i in input_indices:
            for o in output_indices:
                mask[o, i] = 1.0
    return mask


def _linear_init(key, in_f, out_f):
    # PyTorch nn.Linear default: U(-1/sqrt(in_f), 1/sqrt(in_f)) for W and b.
    kw, kb = jax.random.split(key)
    bound = 1.0 / (in_f ** 0.5)
    w = jax.random.uniform(kw, (out_f, in_f), jnp.float32, -bound, bound)
    b = jax.random.uniform(kb, (out_f,), jnp.float32, -bound, bound)
    return np.asarray(w), np.asarray(b)


def init_params(key, arch, model_out_features):
    """Build packed parameter slabs (+ raw copies for the numpy reference)."""
    num_layers = len(arch)
    root_out = arch[-1][1]
    assert max(2 * in_f for in_f, _, _ in arch) <= W_ROWS
    assert max(2 * of for _, of, _ in arch) <= LANE
    assert model_out_features <= LANE

    w_slabs = np.zeros((num_layers + 1, W_ROWS, LANE), np.float32)
    n_bias_rows = ((num_layers + 3 + 7) // 8) * 8
    bias_pack = np.zeros((n_bias_rows, LANE), np.float32)
    raw_layers = []

    for li, (in_f, out_f, conns) in enumerate(arch):
        key, k1, k2 = jax.random.split(key, 3)
        mask = _pruning_mask(in_f, out_f, conns)
        w_mlp, b_mlp = _linear_init(k1, in_f, out_f)
        w_lin, b_lin = _linear_init(k2, in_f, out_f)
        # prune.custom_from_mask + prune.remove == static elementwise masking.
        w_mlp = w_mlp * mask
        w_lin = w_lin * mask
        # Pre-transposed block-diagonal weight: one MXU push per layer.
        w_slabs[li, :in_f, :out_f] = w_mlp.T
        w_slabs[li, in_f:2 * in_f, out_f:2 * out_f] = w_lin.T
        bias_pack[li, :out_f] = b_mlp
        bias_pack[li, out_f:2 * out_f] = b_lin
        raw_layers.append((w_mlp, b_mlp, w_lin, b_lin))

    key, ko = jax.random.split(key)
    w_out, b_out = _linear_init(ko, root_out, model_out_features)
    w_slabs[num_layers, :root_out, :model_out_features] = w_out.T   # lane-dense W_out^T
    bias_pack[num_layers, :root_out] = 1.0                          # BN gamma
    # bias_pack[num_layers + 1] stays zero                          # BN beta
    bias_pack[num_layers + 2, :model_out_features] = b_out          # output bias

    params = {"w_pack": jnp.asarray(w_slabs), "bias_pack": jnp.asarray(bias_pack)}
    raw = {"layers": raw_layers, "w_out": w_out, "b_out": b_out}
    return params, raw


# ------------------------------------------------------------------ forward

def _pick_batch_tile(batch, target=512):
    if batch <= target:
        return batch
    for cand in range(target, 0, -8):            # multiple-of-8 divisor of batch
        if batch % cand == 0:
            return cand
    return batch                                  # fallback: single tile


def miostone_forward(x, params, layer_dims, gate_param, model_out_features,
                     batch_tile=None):
    """Full MIOSTONEModel forward. Returns (logits, total_l0_reg)."""
    batch, n_leaves = x.shape
    if batch_tile is None:
        batch_tile = _pick_batch_tile(batch)
    assert batch % batch_tile == 0
    num_tiles = batch // batch_tile
    root_out = layer_dims[-1][1]

    kernel = make_fused_kernel(tuple(layer_dims), batch)
    gate = jnp.asarray([gate_param], dtype=jnp.float32)

    out_pad = pl.pallas_call(
        kernel,
        out_shape=jax.ShapeDtypeStruct((batch, LANE), jnp.float32),
        grid=(2, num_tiles),                      # (BN pass, batch tile)
        in_specs=[
            # runtime gate scalar in SMEM (no recompile per gate value)
            pl.BlockSpec((1,), lambda p, t: (0,),
                         memory_space=pltpu.MemorySpace.SMEM),
            # packed biases / BN affine / output bias: VMEM-resident
            pl.BlockSpec(params["bias_pack"].shape, lambda p, t: (0, 0)),
            # packed weights: VMEM-resident
            pl.BlockSpec(params["w_pack"].shape, lambda p, t: (0, 0, 0)),
            # batch-tiled activations (double-buffered by the Pallas pipeline)
            pl.BlockSpec((batch_tile, n_leaves), lambda p, t: (t, 0)),
        ],
        # lane-dense output slab; during pass 0 the index stays pinned at block 0
        # (p*t == 0) so no unwritten blocks are flushed; pass 1 writes every tile.
        out_specs=pl.BlockSpec((batch_tile, LANE), lambda p, t: (p * t, 0)),
        scratch_shapes=[pltpu.VMEM((2, root_out), jnp.float32)],   # [sum; sumsq]
        compiler_params=pltpu.CompilerParams(
            dimension_semantics=("arbitrary", "arbitrary")),
    )(gate, params["bias_pack"], params["w_pack"], x)

    logits = out_pad[:, :model_out_features]      # strip lane padding
    total_l0_reg = jnp.float32(0.0)               # deterministic gate => 0 per layer
    return logits, total_l0_reg


# -------------------------------------------------------- numpy reference

def reference_forward(x, raw, gate, model_out_features):
    x = np.asarray(x, np.float64)
    xl = x
    for (wm, bm, wl, bl) in raw["layers"]:
        pre = x @ wm.T.astype(np.float64) + bm.astype(np.float64)
        x_mlp = np.where(pre >= 0.0, pre, LEAKY_SLOPE * pre)
        xl = xl @ wl.T.astype(np.float64) + bl.astype(np.float64)
        x = gate * x_mlp + (1.0 - gate) * xl
    mean = x.mean(axis=0, keepdims=True)
    var = x.var(axis=0, keepdims=True)            # biased variance (BN training)
    xn = (x - mean) / np.sqrt(var + BN_EPS)
    return xn @ raw["w_out"].T.astype(np.float64) + raw["b_out"].astype(np.float64)


# ---------------------------------------------------------------------- main

if __name__ == "__main__":
    arch = build_architecture()
    layer_dims = tuple((in_f, out_f) for (in_f, out_f, _) in arch)
    model_out_features = 2
    node_gate_param = 0.3            # deterministic gate value

    key = jax.random.PRNGKey(0)
    key, xk, pk = jax.random.split(key, 3)

    batch = 8
    n_leaves = arch[0][0]            # 8 leaf features
    x = jax.random.normal(xk, (batch, n_leaves), dtype=jnp.float32)

    params, raw = init_params(pk, arch, model_out_features)

    logits, total_l0 = miostone_forward(x, params, layer_dims,
                                        node_gate_param, model_out_features)
    jax.block_until_ready(logits)

    assert logits.shape == (batch, model_out_features)
    assert logits.dtype == jnp.float32
    assert float(total_l0) == 0.0

    ref = reference_forward(np.asarray(x), raw, node_gate_param, model_out_features)
    np.testing.assert_allclose(np.asarray(logits), ref, rtol=5e-3, atol=5e-3)

    print("KERNEL_OK")
</pallas_src>

<mosaic_0001>
module attributes {stable_mosaic.version = 11 : i64} {
  func.func @kernel(%arg0: i32, %arg1: i32, %arg2: memref<1xf32, #tpu.memory_space<smem>>, %arg3: memref<8x128xf32, #tpu.memory_space<vmem>>, %arg4: memref<4x32x128xf32, #tpu.memory_space<vmem>>, %arg5: memref<8x8xf32, #tpu.memory_space<vmem>>, %arg6: memref<8x128xf32, #tpu.memory_space<vmem>>, %arg7: memref<2x4xf32, #tpu.memory_space<vmem>>) attributes {dimension_semantics = [#tpu.dimension_semantics<arbitrary>, #tpu.dimension_semantics<arbitrary>], iteration_bounds = array<i64: 2, 1>, scalar_prefetch = 0 : i64, scratch_operands = 1 : i64, tpu.core_type = #tpu.core_type<tc>, window_params = [{transform_indices = @transform_0, window_bounds = array<i64: 1>}, {pipeline_mode = #tpu.pipeline_mode<synchronous>, transform_indices = @transform_1, window_bounds = array<i64: 8, 128>}, {pipeline_mode = #tpu.pipeline_mode<synchronous>, transform_indices = @transform_2, window_bounds = array<i64: 4, 32, 128>}, {transform_indices = @transform_3, window_bounds = array<i64: 8, 8>}, {transform_indices = @transform_4, window_bounds = array<i64: 8, 128>}]} {
    %c0 = arith.constant 0 : index
    %0 = memref.load %arg2[%c0] : memref<1xf32, #tpu.memory_space<smem>>
    %c0_0 = arith.constant 0 : index
    %c0_1 = arith.constant 0 : index
    %1 = vector.load %arg3[%c0_0, %c0_1] : memref<8x128xf32, #tpu.memory_space<vmem>>, vector<8x128xf32>
    %c0_2 = arith.constant 0 : index
    %c0_3 = arith.constant 0 : index
    %2 = vector.load %arg5[%c0_2, %c0_3] : memref<8x8xf32, #tpu.memory_space<vmem>>, vector<8x8xf32>
    %3 = tpu.concatenate %2, %2 in 1 : vector<8x8xf32>, vector<8x8xf32> -> vector<8x16xf32>
    %c0_4 = arith.constant 0 : index
    %c0_5 = arith.constant 0 : index
    %c0_6 = arith.constant 0 : index
    %4 = vector.load %arg4[%c0_4, %c0_5, %c0_6] : memref<4x32x128xf32, #tpu.memory_space<vmem>>, vector<1x32x128xf32>
    %5 = vector.shape_cast %4 : vector<1x32x128xf32> to vector<32x128xf32>
    %6 = vector.extract_strided_slice %5 {offsets = [0, 0], sizes = [16, 32], strides = [1, 1]} : vector<32x128xf32> to vector<16x32xf32>
    %7 = vector.extract_strided_slice %1 {offsets = [0, 0], sizes = [1, 32], strides = [1, 1]} : vector<8x128xf32> to vector<1x32xf32>
    %cst = arith.constant dense<0.000000e+00> : vector<8x32xf32>
    %8 = tpu.matmul %3, %6, %cst {dimension_numbers = #tpu.dot_dimension_numbers<[1], [0], [0], [1], [0, 0, 1, 1], [], []>} : vector<8x16xf32>, vector<16x32xf32>, vector<8x32xf32> -> vector<8x32xf32>
    %9 = vector.broadcast %7 : vector<1x32xf32> to vector<8x32xf32>
    %10 = arith.addf %8, %9 : vector<8x32xf32>
    %11 = vector.extract_strided_slice %10 {offsets = [0, 0], sizes = [8, 16], strides = [1, 1]} : vector<8x32xf32> to vector<8x16xf32>
    %12 = vector.extract_strided_slice %10 {offsets = [0, 16], sizes = [8, 16], strides = [1, 1]} : vector<8x32xf32> to vector<8x16xf32>
    %cst_7 = arith.constant 0.00999999977 : f32
    %13 = vector.broadcast %cst_7 : f32 to vector<8x16xf32>
    %14 = arith.mulf %13, %11 : vector<8x16xf32>
    %15 = arith.maximumf %11, %14 : vector<8x16xf32>
    %16 = arith.subf %15, %12 : vector<8x16xf32>
    %17 = vector.broadcast %0 : f32 to vector<8x16xf32>
    %18 = arith.mulf %17, %16 : vector<8x16xf32>
    %19 = arith.addf %12, %18 : vector<8x16xf32>
    %20 = tpu.concatenate %19, %12 in 1 : vector<8x16xf32>, vector<8x16xf32> -> vector<8x32xf32>
    %c1 = arith.constant 1 : index
    %c0_8 = arith.constant 0 : index
    %c0_9 = arith.constant 0 : index
    %21 = vector.load %arg4[%c1, %c0_8, %c0_9] : memref<4x32x128xf32, #tpu.memory_space<vmem>>, vector<1x32x128xf32>
    %22 = vector.shape_cast %21 : vector<1x32x128xf32> to vector<32x128xf32>
    %23 = vector.extract_strided_slice %22 {offsets = [0, 0], sizes = [32, 16], strides = [1, 1]} : vector<32x128xf32> to vector<32x16xf32>
    %24 = vector.extract_strided_slice %1 {offsets = [1, 0], sizes = [1, 16], strides = [1, 1]} : vector<8x128xf32> to vector<1x16xf32>
    %cst_10 = arith.constant dense<0.000000e+00> : vector<8x16xf32>
    %25 = tpu.matmul %20, %23, %cst_10 {dimension_numbers = #tpu.dot_dimension_numbers<[1], [0], [0], [1], [0, 0, 1, 1], [], []>} : vector<8x32xf32>, vector<32x16xf32>, vector<8x16xf32> -> vector<8x16xf32>
    %26 = vector.broadcast %24 : vector<1x16xf32> to vector<8x16xf32>
    %27 = arith.addf %25, %26 : vector<8x16xf32>
    %28 = vector.extract_strided_slice %27 {offsets = [0, 0], sizes = [8, 8], strides = [1, 1]} : vector<8x16xf32> to vector<8x8xf32>
    %29 = vector.extract_strided_slice %27 {offsets = [0, 8], sizes = [8, 8], strides = [1, 1]} : vector<8x16xf32> to vector<8x8xf32>
    %cst_11 = arith.constant 0.00999999977 : f32
    %30 = vector.broadcast %cst_11 : f32 to vector<8x8xf32>
    %31 = arith.mulf %30, %28 : vector<8x8xf32>
    %32 = arith.maximumf %28, %31 : vector<8x8xf32>
    %33 = arith.subf %32, %29 : vector<8x8xf32>
    %34 = vector.broadcast %0 : f32 to vector<8x8xf32>
    %35 = arith.mulf %34, %33 : vector<8x8xf32>
    %36 = arith.addf %29, %35 : vector<8x8xf32>
    %37 = tpu.concatenate %36, %29 in 1 : vector<8x8xf32>, vector<8x8xf32> -> vector<8x16xf32>
    %c2 = arith.constant 2 : index
    %c0_12 = arith.constant 0 : index
    %c0_13 = arith.constant 0 : index
    %38 = vector.load %arg4[%c2, %c0_12, %c0_13] : memref<4x32x128xf32, #tpu.memory_space<vmem>>, vector<1x32x128xf32>
    %39 = vector.shape_cast %38 : vector<1x32x128xf32> to vector<32x128xf32>
    %40 = vector.extract_strided_slice %39 {offsets = [0, 0], sizes = [16, 8], strides = [1, 1]} : vector<32x128xf32> to vector<16x8xf32>
    %41 = vector.extract_strided_slice %1 {offsets = [2, 0], sizes = [1, 8], strides = [1, 1]} : vector<8x128xf32> to vector<1x8xf32>
    %cst_14 = arith.constant dense<0.000000e+00> : vector<8x8xf32>
    %42 = tpu.matmul %37, %40, %cst_14 {dimension_numbers = #tpu.dot_dimension_numbers<[1], [0], [0], [1], [0, 0, 1, 1], [], []>} : vector<8x16xf32>, vector<16x8xf32>, vector<8x8xf32> -> vector<8x8xf32>
    %43 = vector.broadcast %41 : vector<1x8xf32> to vector<8x8xf32>
    %44 = arith.addf %42, %43 : vector<8x8xf32>
    %45 = vector.extract_strided_slice %44 {offsets = [0, 0], sizes = [8, 4], strides = [1, 1]} : vector<8x8xf32> to vector<8x4xf32>
    %46 = vector.extract_strided_slice %44 {offsets = [0, 4], sizes = [8, 4], strides = [1, 1]} : vector<8x8xf32> to vector<8x4xf32>
    %cst_15 = arith.constant 0.00999999977 : f32
    %47 = vector.broadcast %cst_15 : f32 to vector<8x4xf32>
    %48 = arith.mulf %47, %45 : vector<8x4xf32>
    %49 = arith.maximumf %45, %48 : vector<8x4xf32>
    %50 = arith.subf %49, %46 : vector<8x4xf32>
    %51 = vector.broadcast %0 : f32 to vector<8x4xf32>
    %52 = arith.mulf %51, %50 : vector<8x4xf32>
    %53 = arith.addf %46, %52 : vector<8x4xf32>
    %c0_i32 = arith.constant 0 : i32
    %54 = arith.cmpi eq, %arg0, %c0_i32 : i32
    %c0_i32_16 = arith.constant 0 : i32
    %55 = arith.cmpi eq, %arg1, %c0_i32_16 : i32
    %56 = arith.andi %54, %55 : i1
    %57 = arith.extui %56 : i1 to i32
    %c0_i32_17 = arith.constant 0 : i32
    %58 = arith.cmpi ne, %57, %c0_i32_17 : i32
    scf.if %58 {
      %cst_21 = arith.constant 0.000000e+00 : f32
      %65 = vector.broadcast %cst_21 : f32 to vector<2x4xf32>
      %c0_22 = arith.constant 0 : index
      %c0_23 = arith.constant 0 : index
      %66 = vector.load %arg7[%c0_22, %c0_23] : memref<2x4xf32, #tpu.memory_space<vmem>>, vector<2x4xf32>
      tpu.vector_store %arg7[%c0_22, %c0_23], %65 {strides = array<i32>} : memref<2x4xf32, #tpu.memory_space<vmem>>, vector<2x4xf32>,
    } else {
    }
    %c0_i32_18 = arith.constant 0 : i32
    %59 = arith.cmpi eq, %arg0, %c0_i32_18 : i32
    %60 = arith.extui %59 : i1 to i32
    %c0_i32_19 = arith.constant 0 : i32
    %61 = arith.cmpi ne, %60, %c0_i32_19 : i32
    scf.if %61 {
      %c0_21 = arith.constant 0 : index
      %c0_22 = arith.constant 0 : index
      %65 = vector.load %arg7[%c0_21, %c0_22] : memref<2x4xf32, #tpu.memory_space<vmem>>, vector<1x4xf32>
      %cst_23 = arith.constant dense<0.000000e+00> : vector<4xf32>
      %66 = vector.multi_reduction <add>, %53, %cst_23 [0] : vector<8x4xf32> to vector<4xf32>
      %67 = vector.shape_cast %66 : vector<4xf32> to vector<1x4xf32>
      %68 = arith.addf %65, %67 : vector<1x4xf32>
      %c0_24 = arith.constant 0 : index
      %c0_25 = arith.constant 0 : index
      %69 = vector.load %arg7[%c0_24, %c0_25] : memref<2x4xf32, #tpu.memory_space<vmem>>, vector<1x4xf32>
      tpu.vector_store %arg7[%c0_24, %c0_25], %68 {strides = array<i32>} : memref<2x4xf32, #tpu.memory_space<vmem>>, vector<1x4xf32>,
      %c1_26 = arith.constant 1 : index
      %c0_27 = arith.constant 0 : index
      %70 = vector.load %arg7[%c1_26, %c0_27] : memref<2x4xf32, #tpu.memory_space<vmem>>, vector<1x4xf32>
      %71 = arith.mulf %53, %53 : vector<8x4xf32>
      %cst_28 = arith.constant dense<0.000000e+00> : vector<4xf32>
      %72 = vector.multi_reduction <add>, %71, %cst_28 [0] : vector<8x4xf32> to vector<4xf32>
      %73 = vector.shape_cast %72 : vector<4xf32> to vector<1x4xf32>
      %74 = arith.addf %70, %73 : vector<1x4xf32>
      %c1_29 = arith.constant 1 : index
      %c0_30 = arith.constant 0 : index
      %75 = vector.load %arg7[%c1_29, %c0_30] : memref<2x4xf32, #tpu.memory_space<vmem>>, vector<1x4xf32>
      tpu.vector_store %arg7[%c1_29, %c0_30], %74 {strides = array<i32>} : memref<2x4xf32, #tpu.memory_space<vmem>>, vector<1x4xf32>,
    } else {
    }
    %c1_i32 = arith.constant 1 : i32
    %62 = arith.cmpi eq, %arg0, %c1_i32 : i32
    %63 = arith.extui %62 : i1 to i32
    %c0_i32_20 = arith.constant 0 : i32
    %64 = arith.cmpi ne, %63, %c0_i32_20 : i32
    scf.if %64 {
      %c0_21 = arith.constant 0 : index
      %c0_22 = arith.constant 0 : index
      %65 = vector.load %arg7[%c0_21, %c0_22] : memref<2x4xf32, #tpu.memory_space<vmem>>, vector<1x4xf32>
      %cst_23 = arith.constant 1.250000e-01 : f32
      %66 = vector.broadcast %cst_23 : f32 to vector<1x4xf32>
      %67 = arith.mulf %65, %66 : vector<1x4xf32>
      %c1_24 = arith.constant 1 : index
      %c0_25 = arith.constant 0 : index
      %68 = vector.load %arg7[%c1_24, %c0_25] : memref<2x4xf32, #tpu.memory_space<vmem>>, vector<1x4xf32>
      %cst_26 = arith.constant 1.250000e-01 : f32
      %69 = vector.broadcast %cst_26 : f32 to vector<1x4xf32>
      %70 = arith.mulf %68, %69 : vector<1x4xf32>
      %71 = arith.mulf %67, %67 : vector<1x4xf32>
      %72 = arith.subf %70, %71 : vector<1x4xf32>
      %73 = vector.extract_strided_slice %1 {offsets = [3, 0], sizes = [1, 4], strides = [1, 1]} : vector<8x128xf32> to vector<1x4xf32>
      %74 = vector.extract_strided_slice %1 {offsets = [4, 0], sizes = [1, 4], strides = [1, 1]} : vector<8x128xf32> to vector<1x4xf32>
      %75 = vector.extract_strided_slice %1 {offsets = [5, 0], sizes = [1, 128], strides = [1, 1]} : vector<8x128xf32> to vector<1x128xf32>
      %76 = vector.broadcast %67 : vector<1x4xf32> to vector<8x4xf32>
      %77 = arith.subf %53, %76 : vector<8x4xf32>
      %cst_27 = arith.constant 9.99999974E-6 : f32
      %78 = vector.broadcast %cst_27 : f32 to vector<1x4xf32>
      %79 = arith.addf %72, %78 : vector<1x4xf32>
      %80 = math.rsqrt %79 : vector<1x4xf32>
      %81 = vector.broadcast %80 : vector<1x4xf32> to vector<8x4xf32>
      %82 = arith.mulf %77, %81 : vector<8x4xf32>
      %83 = vector.broadcast %73 : vector<1x4xf32> to vector<8x4xf32>
      %84 = arith.mulf %82, %83 : vector<8x4xf32>
      %85 = vector.broadcast %74 : vector<1x4xf32> to vector<8x4xf32>
      %86 = arith.addf %84, %85 : vector<8x4xf32>
      %c3 = arith.constant 3 : index
      %c0_28 = arith.constant 0 : index
      %c0_29 = arith.constant 0 : index
      %87 = vector.load %arg4[%c3, %c0_28, %c0_29] : memref<4x32x128xf32, #tpu.memory_space<vmem>>, vector<1x32x128xf32>
      %88 = vector.shape_cast %87 : vector<1x32x128xf32> to vector<32x128xf32>
      %89 = vector.extract_strided_slice %88 {offsets = [0, 0], sizes = [4, 128], strides = [1, 1]} : vector<32x128xf32> to vector<4x128xf32>
      %cst_30 = arith.constant dense<0.000000e+00> : vector<8x128xf32>
      %90 = tpu.matmul %86, %89, %cst_30 {dimension_numbers = #tpu.dot_dimension_numbers<[1], [0], [0], [1], [0, 0, 1, 1], [], []>} : vector<8x4xf32>, vector<4x128xf32>, vector<8x128xf32> -> vector<8x128xf32>
      %91 = vector.broadcast %75 : vector<1x128xf32> to vector<8x128xf32>
      %92 = arith.addf %90, %91 : vector<8x128xf32>
      %c0_31 = arith.constant 0 : index
      %c0_32 = arith.constant 0 : index
      %93 = vector.load %arg6[%c0_31, %c0_32] : memref<8x128xf32, #tpu.memory_space<vmem>>, vector<8x128xf32>
      tpu.vector_store %arg6[%c0_31, %c0_32], %92 {strides = array<i32>} : memref<8x128xf32, #tpu.memory_space<vmem>>, vector<8x128xf32>,
    } else {
    }
    return
  }
  func.func @transform_0(%arg0: i32, %arg1: i32) -> i32 {
    %c0_i32 = arith.constant 0 : i32
    %c0_i32_0 = arith.constant 0 : i32
    return %c0_i32 : i32
  }
  func.func @transform_1(%arg0: i32, %arg1: i32) -> (i32, i32) {
    %c0_i32 = arith.constant 0 : i32
    %c0_i32_0 = arith.constant 0 : i32
    %c0_i32_1 = arith.constant 0 : i32
    return %c0_i32, %c0_i32_0 : i32, i32
  }
  func.func @transform_2(%arg0: i32, %arg1: i32) -> (i32, i32, i32) {
    %c0_i32 = arith.constant 0 : i32
    %c0_i32_0 = arith.constant 0 : i32
    %c0_i32_1 = arith.constant 0 : i32
    %c0_i32_2 = arith.constant 0 : i32
    return %c0_i32, %c0_i32_0, %c0_i32_1 : i32, i32, i32
  }
  func.func @transform_3(%arg0: i32, %arg1: i32) -> (i32, i32) {
    %c0_i32 = arith.constant 0 : i32
    %c0_i32_0 = arith.constant 0 : i32
    return %arg1, %c0_i32 : i32, i32
  }
  func.func @transform_4(%arg0: i32, %arg1: i32) -> (i32, i32) {
    %0 = arith.muli %arg0, %arg1 : i32
    %c0_i32 = arith.constant 0 : i32
    %c0_i32_0 = arith.constant 0 : i32
    return %0, %c0_i32 : i32, i32
  }
}

</mosaic_0001>

<llo_original>
// kernel: tpu_custom_call.1
$region0: #{tpu_custom_call.1}
  #allocation0 [shape = 'u32[]', space=smem, size = 0x4, offset = 0x4, fixed_abs, tag = 'smem constant byte address 0x4 - core index']
  #allocation1 [shape = 'u32[144,128]{1,0:T(1,128)}', space=vmem, size = 0x12000, scoped, tag = 'internal scratch']
  #allocation2 [shape = 'f32[2,4]{1,0:T(2,128)}', space=vmem, size = 0x400, scoped, tag = 'scratch operand']
  #allocation3 [shape = 'f32[1]{0:T(128)S(6)}', space=smem, size = 0x200, scoped, tag = 'scoped memory for tpu_custom_call.1']
  %s0 = inlined_call_operand.<no memory space> [shape: f32[1], index: 0, kind: input, shape index: {}]
  %s1 = inlined_call_operand.hbm [shape: f32[8,128], index: 1, kind: input, shape index: {}]
  %s2 = inlined_call_operand.hbm [shape: f32[4,32,128], index: 2, kind: input, shape index: {}]
  %s3 = inlined_call_operand.vmem [shape: f32[8,8], index: 3, kind: input, shape index: {}]
  %s4 = inlined_call_operand.hbm [shape: f32[8,128], index: 4, kind: output, shape index: {}]
  %s5 = sld [smem:[#allocation0]]
  $region69: #{tpu_custom_call.1} parent=0
    _
  %s7 = ssub.s32 1, %s5
  %s8 = scalar_select 0, %s7, %s5
  %9 = sst [smem:[#allocation3]] %s0
  $region1: #{tpu_custom_call.1} parent=0
    #allocation4 [shape = 'u8[4096]{0}', space=vmem, size = 0x1000, scoped, tag = 'input window, operand 1, single buffered']
    #allocation5 [shape = 's32[2]{0}', space=sflag, size = 0x8, scoped, tag = 'scoped memory for tpu_custom_call.1']
    #allocation6 [shape = 's32[2]{0}', space=sflag, size = 0x8, scoped, tag = 'scoped memory for tpu_custom_call.1']
    #allocation7 [shape = 'u8[65536]{0}', space=vmem, size = 0x10000, scoped, tag = 'input window, operand 2, single buffered']
    #allocation8 [shape = 's32[1]{0}', space=sflag, size = 0x4, scoped, tag = 'scoped memory for tpu_custom_call.1']
    #allocation9 [shape = 'u8[8192]{0}', space=vmem, size = 0x2000, scoped, tag = 'output window, operand 0']
    %10 = vsyncpa [#allocation5], 0
    %11 = vsyncpa [#allocation8], 0
    %12 = vsyncpa [#allocation6], 0
    %s13 = scalar_lea.sflag [#allocation6], 1
    %14 = vsyncpa %s13, 0
    loop: start=0, step=1, limit=4
    $region2: #{tpu_custom_call.1} parent=1 // loop_pre_header
      _
    $region3: #{tpu_custom_call.1} parent=1 // loop_header
      %s16 = sphi 0, %s20
      %p17 = scmp.ge.s32.totalorder %s16, 4
      %s23 = sphi 0, %s35
      %s24 = sphi 0, %s31
      %s25 = sphi 0, %s23
      %s26 = sphi 0, %s24
      %s27 = sphi 0, %s25
      %s28 = sphi 0, %s26
      %s36 = sphi 0, %s36
      %s38 = sphi 0, %s36
      %s39 = sphi 0, %s38
      %s53 = sphi 0, %s39
      %s57 = sphi 0, %s57
      %s59 = sphi 0, %s57
      %s60 = sphi 0, %s59
      %s74 = sphi 0, %s60
      %s78 = sphi 0, %s78
      %s80 = sphi 0, %s78
      %s81 = sphi 0, %s80
      %s95 = sphi 0, %s81
      %s101 = sphi 0, %s103
      %s104 = sphi 0, %s101
      %s105 = sphi 0, %s104
      %s121 = sphi 0, %s105
      %s129 = sphi 0, %s131
      %s132 = sphi 0, %s129
      %s133 = sphi 0, %s132
      %s149 = sphi 0, %s133
    $region4: #{tpu_custom_call.1} parent=1 // loop_header_branch
      %19 = sbr.rel (%p17) target = $region8
    $region5: #{tpu_custom_call.1} parent=1 // loop_body
      %s21 = ssub.s32 %s16, 1
      %s22 = ssub.s32 %s16, 2
      %s29 = sadd.s32 1, %s24
      %p30 = scmp.ge.s32.totalorder %s29, 1
      %s31 = scalar_select %p30, 0, %s29
      %s32 = sadd.s32 1, %s23
      %s33 = scalar_select %p30, %s32, %s23
      %p34 = scmp.ge.s32.totalorder %s33, 2
      %s35 = scalar_select %p34, 0, %s33
      %s37 = sadd.s32 %s36, 1
      %p40 = scmp.eq.s32.totalorder %s16, 1
      %p41 = scmp.ne.s32.totalorder %s36, %s38
      %p42 = scmp.eq.s32.totalorder %s16, 0
      %p43 = por %p41, %p42
      %p44 = scmp.ne.s32.totalorder %s36, %s38
      %p45 = scmp.eq.s32.totalorder %s21, 1
      %p46 = por %p44, %p45
      %p47 = scmp.ne.s32.totalorder %s38, %s39
      %p48 = scmp.eq.s32.totalorder %s21, 0
      %p49 = por %p47, %p48
      %p50 = scmp.ne.s32.totalorder %s38, %s39
      %p51 = scmp.eq.s32.totalorder %s22, 1
      %p52 = por %p50, %p51
      %p54 = scmp.ne.s32.totalorder %s39, %s53
      %p55 = scmp.eq.s32.totalorder %s22, 0
      %p56 = por %p54, %p55
      %s58 = sadd.s32 %s57, 1
      %p61 = scmp.eq.s32.totalorder %s16, 1
      %p62 = scmp.ne.s32.totalorder %s57, %s59
      %p63 = scmp.eq.s32.totalorder %s16, 0
      %p64 = por %p62, %p63
      %p65 = scmp.ne.s32.totalorder %s57, %s59
      %p66 = scmp.eq.s32.totalorder %s21, 1
      %p67 = por %p65, %p66
      %p68 = scmp.ne.s32.totalorder %s59, %s60
      %p69 = scmp.eq.s32.totalorder %s21, 0
      %p70 = por %p68, %p69
      %p71 = scmp.ne.s32.totalorder %s59, %s60
      %p72 = scmp.eq.s32.totalorder %s22, 1
      %p73 = por %p71, %p72
      %p75 = scmp.ne.s32.totalorder %s60, %s74
      %p76 = scmp.eq.s32.totalorder %s22, 0
      %p77 = por %p75, %p76
      %s79 = sadd.s32 %s78, 1
      %p82 = scmp.eq.s32.totalorder %s16, 1
      %p83 = scmp.ne.s32.totalorder %s78, %s80
      %p84 = scmp.eq.s32.totalorder %s16, 0
      %p85 = por %p83, %p84
      %p86 = scmp.ne.s32.totalorder %s78, %s80
      %p87 = scmp.eq.s32.totalorder %s21, 1
      %p88 = por %p86, %p87
      %p89 = scmp.ne.s32.totalorder %s80, %s81
      %p90 = scmp.eq.s32.totalorder %s21, 0
      %p91 = por %p89, %p90
      %p92 = scmp.ne.s32.totalorder %s80, %s81
      %p93 = scmp.eq.s32.totalorder %s22, 1
      %p94 = por %p92, %p93
      %p96 = scmp.ne.s32.totalorder %s81, %s95
      %p97 = scmp.eq.s32.totalorder %s22, 0
      %p98 = por %p96, %p97
      %s99 = ssub.s32 %s24, %s31
      %p100 = scmp.eq.s32.totalorder %s99, 0
      %s102 = sadd.s32 %s101, 1
      %s103 = scalar_select %p100, %s101, %s102
      %p106 = pneg %p100
      %p107 = scmp.eq.s32.totalorder %s16, 1
      %p108 = por %p106, %p107
      %p109 = scmp.ne.s32.totalorder %s101, %s104
      %p110 = scmp.eq.s32.totalorder %s16, 0
      %p111 = por %p109, %p110
      %p112 = scmp.ne.s32.totalorder %s101, %s104
      %p113 = scmp.eq.s32.totalorder %s21, 1
      %p114 = por %p112, %p113
      %p115 = scmp.ne.s32.totalorder %s104, %s105
      %p116 = scmp.eq.s32.totalorder %s21, 0
      %p117 = por %p115, %p116
      %p118 = scmp.ne.s32.totalorder %s104, %s105
      %p119 = scmp.eq.s32.totalorder %s22, 1
      %p120 = por %p118, %p119
      %p122 = scmp.ne.s32.totalorder %s105, %s121
      %p123 = scmp.eq.s32.totalorder %s22, 0
      %p124 = por %p122, %p123
      %s125 = smul.u32 %s23, %s24
      %s126 = smul.u32 %s35, %s31
      %s127 = ssub.s32 %s125, %s126
      %p128 = scmp.eq.s32.totalorder %s127, 0
      %s130 = sadd.s32 %s129, 1
      %s131 = scalar_select %p128, %s129, %s130
      %p134 = pneg %p128
      %p135 = scmp.eq.s32.totalorder %s16, 1
      %p136 = por %p134, %p135
      %p137 = scmp.ne.s32.totalorder %s129, %s132
      %p138 = scmp.eq.s32.totalorder %s16, 0
      %p139 = por %p137, %p138
      %p140 = scmp.ne.s32.totalorder %s129, %s132
      %p141 = scmp.eq.s32.totalorder %s21, 1
      %p142 = por %p140, %p141
      %p143 = scmp.ne.s32.totalorder %s132, %s133
      %p144 = scmp.eq.s32.totalorder %s21, 0
      %p145 = por %p143, %p144
      %p146 = scmp.ne.s32.totalorder %s132, %s133
      %p147 = scmp.eq.s32.totalorder %s22, 1
      %p148 = por %p146, %p147
      %p150 = scmp.ne.s32.totalorder %s133, %s149
      %p151 = scmp.eq.s32.totalorder %s22, 0
      %p152 = por %p150, %p151
      %p153 = scmp.le.s32.totalorder 1, %s16
      %p154 = scmp.lt.s32.totalorder %s16, 3
      %p155 = pnand %p153, %p154
      %p156 = pneg %p155
      // Predicated region
      $region9: #{tpu_custom_call.1} parent=5 // pred_check
        _
      $region10: #{tpu_custom_call.1} parent=5 // pred_check_branch
        %158 = sbr.rel (%p155) target = $region12
      $region11: #{tpu_custom_call.1} parent=5 // pred_region
        %s159 = ssub.s32 %s16, 1
        // Predicated region
        $region13: #{tpu_custom_call.1} parent=11 // pred_check
          %p160 = pneg %p49
        $region14: #{tpu_custom_call.1} parent=11 // pred_check_branch
          %162 = sbr.rel (%p160) target = $region16
        $region15: #{tpu_custom_call.1} parent=11 // pred_region
          _
        $region16: #{tpu_custom_call.1} parent=11 // pred_fallthru
          _
        // Predicated region
        $region17: #{tpu_custom_call.1} parent=11 // pred_check
          %p163 = pneg %p70
        $region18: #{tpu_custom_call.1} parent=11 // pred_check_branch
          %165 = sbr.rel (%p163) target = $region20
        $region19: #{tpu_custom_call.1} parent=11 // pred_region
          %s167 = ssub.s32 128, 128
          %168 = vsyncadd [#allocation5], %s167
          %s170 = sshll.u32 [#allocation4], 4
          %s171 = int_to_ptr.vmem [resolvable:$true] %s170
          %173 = dma.hbm_to_vmem [thread:$0]  %s1, 128, %s171, [#allocation5]
        $region20: #{tpu_custom_call.1} parent=11 // pred_fallthru
          _
        // Predicated region
        $region21: #{tpu_custom_call.1} parent=11 // pred_check
          %p174 = pneg %p91
        $region22: #{tpu_custom_call.1} parent=11 // pred_check_branch
          %176 = sbr.rel (%p174) target = $region24
        $region23: #{tpu_custom_call.1} parent=11 // pred_region
          %s178 = ssub.s32 2048, 2048
          %179 = vsyncadd [#allocation8], %s178
          %s180 = sshll.u32 [#allocation7], 4
          %s181 = int_to_ptr.vmem [resolvable:$true] %s180
          %186 = dma.hbm_to_vmem [thread:$0]  %s2, 2048, %s181, [#allocation8], 128, 128, 8
        $region24: #{tpu_custom_call.1} parent=11 // pred_fallthru
          _
        // Predicated region
        $region25: #{tpu_custom_call.1} parent=11 // pred_check
          %p187 = pneg %p117
        $region26: #{tpu_custom_call.1} parent=11 // pred_check_branch
          %189 = sbr.rel (%p187) target = $region28
        $region27: #{tpu_custom_call.1} parent=11 // pred_region
          %p190 = scmp.lt.s32.totalorder %s26, 0
          %s191 = scalar_select %p190, %s26, 0
          %s192 = smul.addr %s191, 8
          %s193 = scalar_lea.vmem %s3, %s192
        $region28: #{tpu_custom_call.1} parent=11 // pred_fallthru
          _
      $region12: #{tpu_custom_call.1} parent=5 // pred_fallthru
        _
      %p194 = scmp.lt.s32.totalorder %s16, 2
      // Predicated region
      $region29: #{tpu_custom_call.1} parent=5 // pred_check
        %p195 = pneg %p194
      $region30: #{tpu_custom_call.1} parent=5 // pred_check_branch
        %197 = sbr.rel (%p195) target = $region32
      $region31: #{tpu_custom_call.1} parent=5 // pred_region
        _
      $region32: #{tpu_custom_call.1} parent=5 // pred_fallthru
        _
      %p198 = scmp.le.s32.totalorder 1, %s16
      %p199 = scmp.lt.s32.totalorder %s16, 3
      %p200 = pnand %p198, %p199
      %p201 = pneg %p200
      // Predicated region
      $region33: #{tpu_custom_call.1} parent=5 // pred_check
        _
      $region34: #{tpu_custom_call.1} parent=5 // pred_check_branch
        %203 = sbr.rel (%p200) target = $region36
      $region35: #{tpu_custom_call.1} parent=5 // pred_region
        %s204 = ssub.s32 %s16, 1
        // Predicated region
        $region37: #{tpu_custom_call.1} parent=35 // pred_check
          %p205 = pneg %p70
        $region38: #{tpu_custom_call.1} parent=35 // pred_check_branch
          %207 = sbr.rel (%p205) target = $region40
        $region39: #{tpu_custom_call.1} parent=35 // pred_region
          %208 = dma.done [#allocation5], 128
        $region40: #{tpu_custom_call.1} parent=35 // pred_fallthru
          _
        // Predicated region
        $region41: #{tpu_custom_call.1} parent=35 // pred_check
          %p209 = pneg %p91
        $region42: #{tpu_custom_call.1} parent=35 // pred_check_branch
          %211 = sbr.rel (%p209) target = $region44
        $region43: #{tpu_custom_call.1} parent=35 // pred_region
          %212 = dma.done [#allocation8], 2048
        $region44: #{tpu_custom_call.1} parent=35 // pred_fallthru
          _
        %p213 = pneg %p49
        %p214 = pneg %p46
        %p215 = pneg %p70
        %p216 = pneg %p67
        %p217 = pneg %p91
        %p218 = pneg %p88
        %p219 = scmp.lt.s32.totalorder %s26, 0
        %s220 = scalar_select %p219, %s26, 0
        %s221 = smul.addr %s220, 8
        %s222 = scalar_lea.vmem %s3, %s221
        %p223 = pneg %p117
        %p224 = pneg %p114
        %p225 = pneg %p145
        %p226 = pneg %p142
        %s227 = sand.u32 %s132, 1
        %s228 = scalar_lea.sflag [#allocation6], %s227
        %s229 = sand.u32 %s132, 1
        %s230 = smul.addr %s229, 8
        %s231 = scalar_lea.vmem [#allocation9], %s230
        %p232 = scmp.lt.s32.totalorder %s26, 0
        %s233 = scalar_select %p232, %s26, 0
        %s234 = smul.addr %s233, 8
        %s235 = scalar_lea.vmem %s3, %s234
        %s236 = smul.u32 %s25, %s26
        %s237 = sld [smem:[#allocation3]]
        %v238 = vld [vmem:[#allocation4] sm:$0xff]
        %v239 = vld [vmem:[%s235] sm:$0xff]
        %241 = vrot.lane.b32.xlu0 %v239, 8
        %v242 = vpop.permute.xlu0 %241
        %vm244 = vcmask 64512
        %v245 = vsel %vm244, %v239, %v242
        %v246 = vld [vmem:[#allocation7] sm:$0xff]
        %v247 = vld [vmem:[#allocation7 + $0x8] sm:$0xff]
        %v248 = vlaneseq
        %v249 = vshrl.u32 %v248, 7
        %v250 = vsub.s32 0, %v249
        %v251 = vrot.slane %v238, %v250
        %vm252 = vcmask 130048
        %v254 = vsel %vm252, %v245, 0
        %256 = vmatprep.subr.mxu0 0.0
        %257 = vmatpush1.msra.mxu0 %v246
        %258 = vmatprep.subr.mxu0 0.0
        %259 = vmatpush1.msra.mxu0 %v247
        %260 = vmatprep.subr.mxu0 0.0
        %261 = vmatpush1.msra.mxu0 0.0
        %262 = vmatprep.subr.mxu0 0.0
        %263 = vmatpush1.msra.mxu0 0.0
        %264 = vmatprep.subr.mxu0 0.0
        %265 = vmatpush1.msra.mxu0 0.0
        %266 = vmatprep.subr.mxu0 0.0
        %267 = vmatpush1.msra.mxu0 0.0
        %268 = vmatprep.subr.mxu0 0.0
        %269 = vmatpush1.msra.mxu0 0.0
        %270 = vmatprep.subr.mxu0 0.0
        %271 = vmatpush1.msra.mxu0 0.0
        %272 = vmatprep.subr.mxu0 0.0
        %273 = vmatpush1.msra.mxu0 0.0
        %274 = vmatprep.subr.mxu0 0.0
        %275 = vmatpush1.msra.mxu0 0.0
        %276 = vmatprep.subr.mxu0 0.0
        %277 = vmatpush1.msra.mxu0 0.0
        %278 = vmatprep.subr.mxu0 0.0
        %279 = vmatpush1.msra.mxu0 0.0
        %280 = vmatprep.subr.mxu0 0.0
        %281 = vmatpush1.msra.mxu0 0.0
        %282 = vmatprep.subr.mxu0 0.0
        %283 = vmatpush1.msra.mxu0 0.0
        %284 = vmatprep.subr.mxu0 0.0
        %285 = vmatpush1.msra.mxu0 0.0
        %286 = vmatprep.subr.mxu0 0.0
        %287 = vmatpush1.msra.mxu0 0.0
        %288 = vmatprep.subr.mxu0 0.0
        %289 = vmatpush1.msra.mxu0 0.0
        %290 = vmatprep.subr.mxu0 0.0
        %291 = vmatpush1.msra.mxu0 0.0
        %292 = vmatprep.subr.mxu0 0.0
        %293 = vmatpush1.msra.mxu0 0.0
        %294 = vmatprep.subr.mxu0 0.0
        %295 = vmatpush1.msra.mxu0 0.0
        %296 = vmatprep.subr.mxu0 0.0
        %297 = vmatpush1.msra.mxu0 0.0
        %298 = vmatprep.subr.mxu0 0.0
        %299 = vmatpush1.msra.mxu0 0.0
        %300 = vmatprep.subr.mxu0 0.0
        %301 = vmatpush1.msra.mxu0 0.0
        %302 = vmatprep.subr.mxu0 0.0
        %303 = vmatpush1.msra.mxu0 0.0
        %304 = vmatprep.subr.mxu0 0.0
        %305 = vmatpush1.msra.mxu0 0.0
        %306 = vmatprep.subr.mxu0 0.0
        %307 = vmatpush1.msra.mxu0 0.0
        %308 = vmatprep.subr.mxu0 0.0
        %309 = vmatpush1.msra.mxu0 0.0
        %310 = vmatprep.subr.mxu0 0.0
        %311 = vmatpush1.msra.mxu0 0.0
        %312 = vmatprep.subr.mxu0 0.0
        %313 = vmatpush1.msra.mxu0 0.0
        %314 = vmatprep.subr.mxu0 0.0
        %315 = vmatpush1.msra.mxu0 0.0
        %316 = vmatprep.subr.mxu0 0.0
        %317 = vmatpush1.msra.mxu0 0.0
        %318 = vmatprep.subr.mxu0 0.0
        %319 = vmatpush1.msra.mxu0 0.0
        %320 = vmatprep.mubr.f32.mxu0 0.0
        %321 = vmatmul.mubr.f32.gmra.mrb[0].mxu0 %v254
        %v322 = vpop.f32.mrb[0].mxu0
        %v323 = vadd.f32 %v251, %v322
        %v324 = vpop.f32.mrb[0].mxu0
        %325 = vdwg.mxu0
        %v326 = vmul.f32 %v323, 0.01
        %v327 = vmax.f32 %v323, %v326
        %329 = vrot.lane.b32.xlu0 %v323, 112
        %v330 = vpop.permute.xlu0 %329
        %v332 = vsub.f32 %v327, %v330
        %v333 = vstv %s237
        %v334 = vmul.f32 %v333, %v332
        %336 = vrot.lane.b32.xlu0 %v334, 16
        %v337 = vpop.permute.xlu0 %336
        %v339 = vadd.f32 %v323, %v337
        %341 = vrot.lane.b32.xlu0 %v339, 112
        %v342 = vpop.permute.xlu0 %341
        %v344 = vsel %vm252, %v342, %v323
        %s345 = scalar_lea.vmem [#allocation7], 32
        %v346 = vld [vmem:[%s345] sm:$0xff]
        %v347 = vld [vmem:[%s345 + $0x8] sm:$0xff]
        %v348 = vld [vmem:[%s345 + $0x10] sm:$0xff]
        %v349 = vld [vmem:[%s345 + $0x18] sm:$0xff]
        %v350 = vlaneseq
        %v351 = vshrl.u32 %v350, 7
        %v352 = vsub.s32 1, %v351
        %v353 = vrot.slane %v238, %v352
        %vm354 = vcmask 261120
        %v356 = vsel %vm354, %v344, 0
        %358 = vmatprep.subr.mxu0 0.0
        %359 = vmatpush1.msra.mxu0 %v346
        %360 = vmatprep.subr.mxu0 0.0
        %361 = vmatpush1.msra.mxu0 %v347
        %362 = vmatprep.subr.mxu0 0.0
        %363 = vmatpush1.msra.mxu0 %v348
        %364 = vmatprep.subr.mxu0 0.0
        %365 = vmatpush1.msra.mxu0 %v349
        %366 = vmatprep.subr.mxu0 0.0
        %367 = vmatpush1.msra.mxu0 0.0
        %368 = vmatprep.subr.mxu0 0.0
        %369 = vmatpush1.msra.mxu0 0.0
        %370 = vmatprep.subr.mxu0 0.0
        %371 = vmatpush1.msra.mxu0 0.0
        %372 = vmatprep.subr.mxu0 0.0
        %373 = vmatpush1.msra.mxu0 0.0
        %374 = vmatprep.subr.mxu0 0.0
        %375 = vmatpush1.msra.mxu0 0.0
        %376 = vmatprep.subr.mxu0 0.0
        %377 = vmatpush1.msra.mxu0 0.0
        %378 = vmatprep.subr.mxu0 0.0
        %379 = vmatpush1.msra.mxu0 0.0
        %380 = vmatprep.subr.mxu0 0.0
        %381 = vmatpush1.msra.mxu0 0.0
        %382 = vmatprep.subr.mxu0 0.0
        %383 = vmatpush1.msra.mxu0 0.0
        %384 = vmatprep.subr.mxu0 0.0
        %385 = vmatpush1.msra.mxu0 0.0
        %386 = vmatprep.subr.mxu0 0.0
        %387 = vmatpush1.msra.mxu0 0.0
        %388 = vmatprep.subr.mxu0 0.0
        %389 = vmatpush1.msra.mxu0 0.0
        %390 = vmatprep.subr.mxu0 0.0
        %391 = vmatpush1.msra.mxu0 0.0
        %392 = vmatprep.subr.mxu0 0.0
        %393 = vmatpush1.msra.mxu0 0.0
        %394 = vmatprep.subr.mxu0 0.0
        %395 = vmatpush1.msra.mxu0 0.0
        %396 = vmatprep.subr.mxu0 0.0
        %397 = vmatpush1.msra.mxu0 0.0
        %398 = vmatprep.subr.mxu0 0.0
        %399 = vmatpush1.msra.mxu0 0.0
        %400 = vmatprep.subr.mxu0 0.0
        %401 = vmatpush1.msra.mxu0 0.0
        %402 = vmatprep.subr.mxu0 0.0
        %403 = vmatpush1.msra.mxu0 0.0
        %404 = vmatprep.subr.mxu0 0.0
        %405 = vmatpush1.msra.mxu0 0.0
        %406 = vmatprep.subr.mxu0 0.0
        %407 = vmatpush1.msra.mxu0 0.0
        %408 = vmatprep.subr.mxu0 0.0
        %409 = vmatpush1.msra.mxu0 0.0
        %410 = vmatprep.subr.mxu0 0.0
        %411 = vmatpush1.msra.mxu0 0.0
        %412 = vmatprep.subr.mxu0 0.0
        %413 = vmatpush1.msra.mxu0 0.0
        %414 = vmatprep.subr.mxu0 0.0
        %415 = vmatpush1.msra.mxu0 0.0
        %416 = vmatprep.subr.mxu0 0.0
        %417 = vmatpush1.msra.mxu0 0.0
        %418 = vmatprep.subr.mxu0 0.0
        %419 = vmatpush1.msra.mxu0 0.0
        %420 = vmatprep.subr.mxu0 0.0
        %421 = vmatpush1.msra.mxu0 0.0
        %422 = vmatprep.mubr.f32.mxu0 0.0
        %423 = vmatmul.mubr.f32.gmra.mrb[0].mxu0 %v356
        %v424 = vpop.f32.mrb[0].mxu0
        %v425 = vadd.f32 %v353, %v424
        %v426 = vpop.f32.mrb[0].mxu0
        %427 = vdwg.mxu0
        %v428 = vmul.f32 %v425, 0.01
        %v429 = vmax.f32 %v425, %v428
        %431 = vrot.lane.b32.xlu0 %v425, 120
        %v432 = vpop.permute.xlu0 %431
        %v434 = vsub.f32 %v429, %v432
        %v435 = vmul.f32 %v333, %v434
        %437 = vrot.lane.b32.xlu0 %v435, 8
        %v438 = vpop.permute.xlu0 %437
        %v440 = vadd.f32 %v425, %v438
        %442 = vrot.lane.b32.xlu0 %v440, 120
        %v443 = vpop.permute.xlu0 %442
        %v445 = vsel %vm244, %v443, %v425
        %s446 = scalar_lea.vmem [#allocation7], 64
        %v447 = vld [vmem:[%s446] sm:$0xff]
        %v448 = vld [vmem:[%s446 + $0x8] sm:$0xff]
        %v449 = vlaneseq
        %v450 = vshrl.u32 %v449, 7
        %v451 = vsub.s32 2, %v450
        %v452 = vrot.slane %v238, %v451
        %v454 = vsel %vm252, %v445, 0
        %456 = vmatprep.subr.mxu0 0.0
        %457 = vmatpush1.msra.mxu0 %v447
        %458 = vmatprep.subr.mxu0 0.0
        %459 = vmatpush1.msra.mxu0 %v448
        %460 = vmatprep.subr.mxu0 0.0
        %461 = vmatpush1.msra.mxu0 0.0
        %462 = vmatprep.subr.mxu0 0.0
        %463 = vmatpush1.msra.mxu0 0.0
        %464 = vmatprep.subr.mxu0 0.0
        %465 = vmatpush1.msra.mxu0 0.0
        %466 = vmatprep.subr.mxu0 0.0
        %467 = vmatpush1.msra.mxu0 0.0
        %468 = vmatprep.subr.mxu0 0.0
        %469 = vmatpush1.msra.mxu0 0.0
        %470 = vmatprep.subr.mxu0 0.0
        %471 = vmatpush1.msra.mxu0 0.0
        %472 = vmatprep.subr.mxu0 0.0
        %473 = vmatpush1.msra.mxu0 0.0
        %474 = vmatprep.subr.mxu0 0.0
        %475 = vmatpush1.msra.mxu0 0.0
        %476 = vmatprep.subr.mxu0 0.0
        %477 = vmatpush1.msra.mxu0 0.0
        %478 = vmatprep.subr.mxu0 0.0
        %479 = vmatpush1.msra.mxu0 0.0
        %480 = vmatprep.subr.mxu0 0.0
        %481 = vmatpush1.msra.mxu0 0.0
        %482 = vmatprep.subr.mxu0 0.0
        %483 = vmatpush1.msra.mxu0 0.0
        %484 = vmatprep.subr.mxu0 0.0
        %485 = vmatpush1.msra.mxu0 0.0
        %486 = vmatprep.subr.mxu0 0.0
        %487 = vmatpush1.msra.mxu0 0.0
        %488 = vmatprep.subr.mxu0 0.0
        %489 = vmatpush1.msra.mxu0 0.0
        %490 = vmatprep.subr.mxu0 0.0
        %491 = vmatpush1.msra.mxu0 0.0
        %492 = vmatprep.subr.mxu0 0.0
        %493 = vmatpush1.msra.mxu0 0.0
        %494 = vmatprep.subr.mxu0 0.0
        %495 = vmatpush1.msra.mxu0 0.0
        %496 = vmatprep.subr.mxu0 0.0
        %497 = vmatpush1.msra.mxu0 0.0
        %498 = vmatprep.subr.mxu0 0.0
        %499 = vmatpush1.msra.mxu0 0.0
        %500 = vmatprep.subr.mxu0 0.0
        %501 = vmatpush1.msra.mxu0 0.0
        %502 = vmatprep.subr.mxu0 0.0
        %503 = vmatpush1.msra.mxu0 0.0
        %504 = vmatprep.subr.mxu0 0.0
        %505 = vmatpush1.msra.mxu0 0.0
        %506 = vmatprep.subr.mxu0 0.0
        %507 = vmatpush1.msra.mxu0 0.0
        %508 = vmatprep.subr.mxu0 0.0
        %509 = vmatpush1.msra.mxu0 0.0
        %510 = vmatprep.subr.mxu0 0.0
        %511 = vmatpush1.msra.mxu0 0.0
        %512 = vmatprep.subr.mxu0 0.0
        %513 = vmatpush1.msra.mxu0 0.0
        %514 = vmatprep.subr.mxu0 0.0
        %515 = vmatpush1.msra.mxu0 0.0
        %516 = vmatprep.subr.mxu0 0.0
        %517 = vmatpush1.msra.mxu0 0.0
        %518 = vmatprep.subr.mxu0 0.0
        %519 = vmatpush1.msra.mxu0 0.0
        %520 = vmatprep.mubr.f32.mxu0 0.0
        %521 = vmatmul.mubr.f32.gmra.mrb[0].mxu0 %v454
        %v522 = vpop.f32.mrb[0].mxu0
        %v523 = vadd.f32 %v452, %v522
        %v524 = vpop.f32.mrb[0].mxu0
        %525 = vdwg.mxu0
        %v526 = vmul.f32 %v523, 0.01
        %v527 = vmax.f32 %v523, %v526
        %529 = vrot.lane.b32.xlu0 %v523, 124
        %v530 = vpop.permute.xlu0 %529
        %v532 = vsub.f32 %v527, %v530
        %v533 = vmul.f32 %v333, %v532
        %535 = vrot.lane.b32.xlu0 %v533, 4
        %v536 = vpop.permute.xlu0 %535
        %v538 = vadd.f32 %v523, %v536
        %p539 = scmp.eq.s32.totalorder %s25, 0
        %p540 = scmp.eq.s32.totalorder %s26, 0
        %p541 = pnand %p539, %p540
        %p542 = pneg %p541
        // Predicated region
        $region45: #{tpu_custom_call.1} parent=35 // pred_check
          _
        $region46: #{tpu_custom_call.1} parent=35 // pred_check_branch
          %544 = sbr.rel (%p541) target = $region48
        $region47: #{tpu_custom_call.1} parent=35 // pred_region
          %vm545 = vcmask 25600
          %546 = vst.msk [vmem:[#allocation2] sm:$0x3] %vm545, 0.0
        $region48: #{tpu_custom_call.1} parent=35 // pred_fallthru
          _
        // Predicated region
        $region49: #{tpu_custom_call.1} parent=35 // pred_check
          %p547 = pneg %p539
        $region50: #{tpu_custom_call.1} parent=35 // pred_check_branch
          %549 = sbr.rel (%p547) target = $region52
        $region51: #{tpu_custom_call.1} parent=35 // pred_region
          %v550 = vld [vmem:[#allocation2] sm:$0x1]
          %vm551 = vcmask 64544
          %v552 = vsel %vm551, %v538, 0.0
          %v553 = vrot.slane %v552, 4
          %v554 = vadd.f32 %v552, %v553
          %v555 = vrot.slane %v554, 2
          %v556 = vadd.f32 %v554, %v555
          %v557 = vrot.slane %v556, 1
          %v558 = vadd.f32 %v556, %v557
          %560 = vrot.lane.b32.xlu0 %v558, 124
          %v561 = vpop.permute.xlu0 %560
          %v563 = vadd.f32 %v550, %v561
          %vm564 = vcmask 24576
          %565 = vst.msk [vmem:[#allocation2] sm:$0x1] %vm564, %v563
          %v566 = vld [vmem:[#allocation2 + $0x1] sm:$0x1]
          %v567 = vmul.f32 %v538, %v538
          %v568 = vsel %vm551, %v567, 0.0
          %v569 = vrot.slane %v568, 4
          %v570 = vadd.f32 %v568, %v569
          %v571 = vrot.slane %v570, 2
          %v572 = vadd.f32 %v570, %v571
          %v573 = vrot.slane %v572, 1
          %v574 = vadd.f32 %v572, %v573
          %576 = vrot.lane.b32.xlu0 %v574, 124
          %v577 = vpop.permute.xlu0 %576
          %v579 = vadd.f32 %v566, %v577
          %580 = vst.msk [vmem:[#allocation2 + $0x1] sm:$0x1] %vm564, %v579
        $region52: #{tpu_custom_call.1} parent=35 // pred_fallthru
          _
        %p581 = scmp.eq.s32.totalorder %s25, 1
        // Predicated region
        $region53: #{tpu_custom_call.1} parent=35 // pred_check
          %p582 = pneg %p581
        $region54: #{tpu_custom_call.1} parent=35 // pred_check_branch
          %584 = sbr.rel (%p582) target = $region56
        $region55: #{tpu_custom_call.1} parent=35 // pred_region
          %v585 = vld [vmem:[#allocation2] sm:$0x1]
          %v586 = vmul.f32 %v585, 0.125
          %v587 = vld [vmem:[#allocation2 + $0x1] sm:$0x1]
          %v588 = vmul.f32 %v587, 0.125
          %v589 = vmul.f32 %v586, %v586
          %v590 = vsub.f32 %v588, %v589
          %v591 = vlaneseq
          %v592 = vshrl.u32 %v591, 7
          %v593 = vsub.s32 0, %v592
          %v594 = vrot.slane %v586, %v593
          %596 = vrot.lane.b32.xlu0 %v594, 4
          %v597 = vpop.permute.xlu0 %596
          %v599 = vsub.f32 %v538, %v597
          %v600 = vadd.f32 %v590, 1e-05
          %v601 = vrsqrt.pop %v600
          %v602 = vlaneseq
          %v603 = vshrl.u32 %v602, 7
          %v604 = vsub.s32 0, %v603
          %v605 = vrot.slane %v601, %v604
          %607 = vrot.lane.b32.xlu0 %v605, 4
          %v608 = vpop.permute.xlu0 %607
          %v610 = vmul.f32 %v599, %v608
          %v611 = vlaneseq
          %v612 = vshrl.u32 %v611, 7
          %v613 = vsub.s32 3, %v612
          %v614 = vrot.slane %v238, %v613
          %616 = vrot.lane.b32.xlu0 %v614, 4
          %v617 = vpop.permute.xlu0 %616
          %v619 = vmul.f32 %v610, %v617
          %v620 = vlaneseq
          %v621 = vshrl.u32 %v620, 7
          %v622 = vsub.s32 4, %v621
          %v623 = vrot.slane %v238, %v622
          %625 = vrot.lane.b32.xlu0 %v623, 4
          %v626 = vpop.permute.xlu0 %625
          %v628 = vadd.f32 %v619, %v626
          %s629 = scalar_lea.vmem [#allocation7], 96
          %v630 = vld [vmem:[%s629] sm:$0xff]
          %v631 = vlaneseq
          %v632 = vshrl.u32 %v631, 7
          %v633 = vsub.s32 5, %v632
          %v634 = vrot.slane %v238, %v633
          %636 = vrot.lane.b32.xlu0 %v628, 124
          %v637 = vpop.permute.xlu0 %636
          %vm638 = vcmask 31744
          %v639 = vsel %vm638, %v637, 0
          %vm641 = vcmask 1043456
          %v643 = vsel %vm641, %v630, 0
          %645 = vmatprep.subr.mxu0 0.0
          %646 = vmatpush1.msra.mxu0 %v643
          %647 = vmatprep.subr.mxu0 0.0
          %648 = vmatpush1.msra.mxu0 0.0
          %649 = vmatprep.subr.mxu0 0.0
          %650 = vmatpush1.msra.mxu0 0.0
          %651 = vmatprep.subr.mxu0 0.0
          %652 = vmatpush1.msra.mxu0 0.0
          %653 = vmatprep.subr.mxu0 0.0
          %654 = vmatpush1.msra.mxu0 0.0
          %655 = vmatprep.subr.mxu0 0.0
          %656 = vmatpush1.msra.mxu0 0.0
          %657 = vmatprep.subr.mxu0 0.0
          %658 = vmatpush1.msra.mxu0 0.0
          %659 = vmatprep.subr.mxu0 0.0
          %660 = vmatpush1.msra.mxu0 0.0
          %661 = vmatprep.subr.mxu0 0.0
          %662 = vmatpush1.msra.mxu0 0.0
          %663 = vmatprep.subr.mxu0 0.0
          %664 = vmatpush1.msra.mxu0 0.0
          %665 = vmatprep.subr.mxu0 0.0
          %666 = vmatpush1.msra.mxu0 0.0
          %667 = vmatprep.subr.mxu0 0.0
          %668 = vmatpush1.msra.mxu0 0.0
          %669 = vmatprep.subr.mxu0 0.0
          %670 = vmatpush1.msra.mxu0 0.0
          %671 = vmatprep.subr.mxu0 0.0
          %672 = vmatpush1.msra.mxu0 0.0
          %673 = vmatprep.subr.mxu0 0.0
          %674 = vmatpush1.msra.mxu0 0.0
          %675 = vmatprep.subr.mxu0 0.0
          %676 = vmatpush1.msra.mxu0 0.0
          %677 = vmatprep.subr.mxu0 0.0
          %678 = vmatpush1.msra.mxu0 0.0
          %679 = vmatprep.subr.mxu0 0.0
          %680 = vmatpush1.msra.mxu0 0.0
          %681 = vmatprep.subr.mxu0 0.0
          %682 = vmatpush1.msra.mxu0 0.0
          %683 = vmatprep.subr.mxu0 0.0
          %684 = vmatpush1.msra.mxu0 0.0
          %685 = vmatprep.subr.mxu0 0.0
          %686 = vmatpush1.msra.mxu0 0.0
          %687 = vmatprep.subr.mxu0 0.0
          %688 = vmatpush1.msra.mxu0 0.0
          %689 = vmatprep.subr.mxu0 0.0
          %690 = vmatpush1.msra.mxu0 0.0
          %691 = vmatprep.subr.mxu0 0.0
          %692 = vmatpush1.msra.mxu0 0.0
          %693 = vmatprep.subr.mxu0 0.0
          %694 = vmatpush1.msra.mxu0 0.0
          %695 = vmatprep.subr.mxu0 0.0
          %696 = vmatpush1.msra.mxu0 0.0
          %697 = vmatprep.subr.mxu0 0.0
          %698 = vmatpush1.msra.mxu0 0.0
          %699 = vmatprep.subr.mxu0 0.0
          %700 = vmatpush1.msra.mxu0 0.0
          %701 = vmatprep.subr.mxu0 0.0
          %702 = vmatpush1.msra.mxu0 0.0
          %703 = vmatprep.subr.mxu0 0.0
          %704 = vmatpush1.msra.mxu0 0.0
          %705 = vmatprep.subr.mxu0 0.0
          %706 = vmatpush1.msra.mxu0 0.0
          %707 = vmatprep.subr.mxu0 0.0
          %708 = vmatpush1.msra.mxu0 0.0
          %709 = vmatprep.mubr.f32.mxu0 0.0
          %710 = vmatmul.mubr.f32.gmra.mrb[0].mxu0 %v639
          %v711 = vpop.f32.mrb[0].mxu0
          %v712 = vadd.f32 %v634, %v711
          %v713 = vpop.f32.mrb[0].mxu0
          %714 = vdwg.mxu0
          %715 = vst [vmem:[%s231] sm:$0xff] %v712
        $region56: #{tpu_custom_call.1} parent=35 // pred_fallthru
          _
        %s716 = sand.u32 %s132, 1
        %s717 = scalar_lea.sflag [#allocation6], %s716
        %s718 = sand.u32 %s132, 1
        %s719 = smul.addr %s718, 8
        %s720 = scalar_lea.vmem [#allocation9], %s719
        // Predicated region
        $region57: #{tpu_custom_call.1} parent=35 // pred_check
          %p721 = pneg %p142
        $region58: #{tpu_custom_call.1} parent=35 // pred_check_branch
          %723 = sbr.rel (%p721) target = $region60
        $region59: #{tpu_custom_call.1} parent=35 // pred_region
          %s724 = smul.u32 %s25, %s26
          %s726 = ssub.s32 128, 128
          %727 = vsyncadd %s717, %s726
          %s728 = smul.addr %s724, 128
          %s729 = scalar_lea.hbm %s4, %s728
          %s731 = sshll.u32 %s720, 4
          %s732 = int_to_ptr.vmem [resolvable:$true] %s731
          %734 = dma.vmem_to_hbm [thread:$0]  %s732, 128, %s729, %s717
        $region60: #{tpu_custom_call.1} parent=35 // pred_fallthru
          _
      $region36: #{tpu_custom_call.1} parent=5 // pred_fallthru
        _
      %p735 = scmp.le.s32.totalorder 2, %s16
      // Predicated region
      $region61: #{tpu_custom_call.1} parent=5 // pred_check
        %p736 = pneg %p735
      $region62: #{tpu_custom_call.1} parent=5 // pred_check_branch
        %738 = sbr.rel (%p736) target = $region64
      $region63: #{tpu_custom_call.1} parent=5 // pred_region
        %s739 = ssub.s32 %s16, 2
        // Predicated region
        $region65: #{tpu_custom_call.1} parent=63 // pred_check
          %p740 = pneg %p148
        $region66: #{tpu_custom_call.1} parent=63 // pred_check_branch
          %742 = sbr.rel (%p740) target = $region68
        $region67: #{tpu_custom_call.1} parent=63 // pred_region
          %s743 = sand.u32 %s133, 1
          %s744 = scalar_lea.sflag [#allocation6], %s743
          %s745 = sand.u32 %s133, 1
          %s746 = smul.addr %s745, 8
          %s747 = scalar_lea.vmem [#allocation9], %s746
          %748 = dma.done %s744, 128
        $region68: #{tpu_custom_call.1} parent=63 // pred_fallthru
          _
      $region64: #{tpu_custom_call.1} parent=5 // pred_fallthru
        _
    $region6: #{tpu_custom_call.1} parent=1 // loop_footer
      %s20 = sadd.s32 1, %s16
    $region7: #{tpu_custom_call.1} parent=1 // loop_footer_branch
      %15 = sbr.rel target = $region3
    $region8: #{tpu_custom_call.1} parent=1 // loop_exit
      _
    %749 = vsyncpa [#allocation5], 1
    %s750 = scalar_lea.sflag [#allocation5], 1
    %751 = vsyncpa %s750, 1
    %752 = vsyncpa [#allocation8], 1
    %753 = vsyncpa [#allocation6], 1
    %s754 = scalar_lea.sflag [#allocation6], 1
    %755 = vsyncpa %s754, 1

</llo_original>
